<compile_context>
chip_gen: v7x
topology: tpu7x:2x2x1
jax: 0.10.0
libtpu: 0.0.40
codegen_flags: <defaults>
</compile_context>

<pallas_src>
import jax
import jax.numpy as jnp
from jax.experimental import pallas as pl
from jax.experimental.pallas import tpu as pltpu

# ---- Model dimensions (n_conditions must be 5: the PyTorch forward hardcodes expand(-1, 5, -1)) ----
N_CONDITIONS = 5
ONEHOT_CHANNEL = 16
HIDDEN = 64
IMG_CHANNEL = 128

_TARGET_TB_V7X = 8192   # ~24 MiB of double-buffered lane-padded tiles + ~16 MiB intermediates < 64 MiB
_TARGET_TB = 4096       # v5e/v6e: per-step DMA already >= ~3 us -> >=90% amortized


def _round_up(v, m):
    return ((v + m - 1) // m) * m


def _lane_pad(n):
    # VMEM tiles pad the last (lane) dim to a multiple of 128.
    return _round_up(max(int(n), 1), 128)


def _chip_info():
    """Return (physical_vmem_bytes, is_multi_tensorcore_chip) with conservative fallbacks."""
    vmem = None
    try:
        vmem = getattr(pltpu.get_tpu_info(), "vmem_capacity_bytes", None)
    except Exception:
        pass
    kind = ""
    try:
        kind = jax.devices()[0].device_kind.lower()
    except Exception:
        pass
    is_v7 = "v7" in kind
    if vmem is None:
        # v7x has 64 MiB/TC; v5e/v6e have 128 MiB.
        vmem = (64 if is_v7 else 128) * 1024 * 1024
    return int(vmem), is_v7


def csa_fusion_kernel(x_ref, c_ref, w1_ref, b1_ref, w2_ref, b2_ref, masks_ref, o_ref):
    # weight_classifier: Linear(OH->64) -> ReLU -> Linear(64->NC) -> Softmax(dim=-1).
    # The tiny K=16 / N=5 matmuls and the (tb,5) softmax hide under the x DMA.
    h = jnp.dot(c_ref[...].astype(jnp.float32), w1_ref[...],
                preferred_element_type=jnp.float32) + b1_ref[...]
    h = jnp.maximum(h, 0.0)                                                   # ReLU
    logits = jnp.dot(h, w2_ref[...], preferred_element_type=jnp.float32) + b2_ref[...]
    logits = logits - jnp.max(logits, axis=-1, keepdims=True)                 # stable softmax
    e = jnp.exp(logits)

    # Fold the mean(dim=1) factor 1/5 into the softmax denominator: one multiply over
    # (tb, 1) instead of a (tb, C) multiply on the output store path.
    denom = jnp.sum(e, axis=-1, keepdims=True) * 5.0                          # forward hardcodes 5
    # EUP approx reciprocal + one Newton step (on a (tb,1) vector, hidden under the
    # x DMA): keeps the denominator within ~1e-7 of the exact divide.
    r = pl.reciprocal(denom, approx=True)
    r = r * (2.0 - denom * r)
    weight = e * r                                                            # (tb, NC), already /5

    # (B,5,C) fused product + mean(dim=1)  ==  x * (weight @ masks)
    scale = jnp.dot(weight, masks_ref[...].astype(jnp.float32),
                    preferred_element_type=jnp.float32)                       # (tb, C)
    # x may be bf16: promote to f32 for the multiply (v5e has no bf16 VPU), cast on store.
    o_ref[...] = (x_ref[...].astype(jnp.float32) * scale).astype(o_ref.dtype)


def csa_fusion(x, c, w1, b1, w2, b2, masks, *, tb=None, out_dtype=None):
    B, C = x.shape
    OH = c.shape[1]
    H = w1.shape[1]
    NC = w2.shape[1]
    assert NC == N_CONDITIONS == masks.shape[0], "PyTorch forward hardcodes expand(-1, 5, -1)"
    out_dtype = jnp.dtype(out_dtype) if out_dtype is not None else jnp.dtype(x.dtype)

    physical_vmem, is_v7 = _chip_info()
    # bf16 streams pack 16 rows per sublane; f32 packs 8.
    sublane = 8 if jnp.dtype(x.dtype).itemsize >= 4 else 16

    # ---- batch tiling (no host-side pad: Pallas masks the ragged last block) ----
    tb_arg = tb
    if tb is None:
        target = _TARGET_TB_V7X if is_v7 else _TARGET_TB
        if B > target:
            tb = target
        elif is_v7 and B >= 2 * sublane:
            # Split small batches in two only on v7x so both TensorCores get work
            # via the "parallel" grid axis.
            tb = _round_up(-(-B // 2), sublane)
        else:
            # Single-TC chips (v5e/v6e): one tile; splitting a small batch only adds a
            # second ~0.35us grid step plus an extra constant-weight fetch.
            tb = B
    if tb >= B:
        tb = B                                  # full-extent block: no alignment requirement
    else:
        tb = min(_round_up(tb, sublane), B)     # blocked dim must be sublane-aligned
    grid = -(-B // tb)                          # cdiv; last block may be ragged

    # ---- VMEM accounting (lane-padded) -> tile shrink + vmem_limit_bytes ----
    x_isz = jnp.dtype(x.dtype).itemsize
    c_isz = jnp.dtype(c.dtype).itemsize
    o_isz = out_dtype.itemsize

    def vmem_estimate(tb_, stream_bufs):
        tiles = (stream_bufs * tb_ * _lane_pad(C) * x_isz          # x   (streamed)
                 + stream_bufs * tb_ * _lane_pad(C) * o_isz        # out (streamed)
                 + 2 * tb_ * _lane_pad(OH) * c_isz)                # c   (lane-padded to 128!)
        consts = 2 * 4 * (_round_up(OH, 8) * _lane_pad(H) + _lane_pad(H)
                          + _round_up(H, 8) * _lane_pad(NC) + _lane_pad(NC)
                          + _round_up(NC, 8) * _lane_pad(C))
        interm = 4 * tb_ * 128 * 4              # h / logits / weight / scale (f32, lane-padded)
        return tiles + consts + interm

    budget = int(0.85 * physical_vmem)
    if tb_arg is None:
        # Shrink auto-chosen tiles until the lane-padded footprint fits comfortably.
        while tb > 2 * sublane and vmem_estimate(tb, 2) > budget:
            tb = max(sublane, _round_up(tb // 2, sublane))
        grid = -(-B // tb)

    # Optional 3-deep pipelining of the streamed x/out on v7x (short ~1.4us steps).
    deep = bool(is_v7 and grid >= 3 and hasattr(pl, "Buffered")
                and vmem_estimate(tb, 3) <= budget)
    est = vmem_estimate(tb, 3 if deep else 2)
    vmem_limit = int(min(0.9 * physical_vmem, max(est * 1.3, 32 * 1024 * 1024)))

    def stream_spec(shape):
        if deep:
            return pl.BlockSpec(shape, lambda i: (i, 0), pipeline_mode=pl.Buffered(3))
        return pl.BlockSpec(shape, lambda i: (i, 0))

    out = pl.pallas_call(
        csa_fusion_kernel,
        out_shape=jax.ShapeDtypeStruct((B, C), out_dtype),
        grid_spec=pltpu.PrefetchScalarGridSpec(
            num_scalar_prefetch=0,
            grid=(grid,),
            in_specs=[
                stream_spec((tb, C)),                        # x      (streamed)
                pl.BlockSpec((tb, OH), lambda i: (i, 0)),    # c      (streamed)
                pl.BlockSpec((OH, H), lambda i: (0, 0)),     # W1     (constant index_map -> fetched once)
                pl.BlockSpec((1, H), lambda i: (0, 0)),      # b1
                pl.BlockSpec((H, NC), lambda i: (0, 0)),     # W2
                pl.BlockSpec((1, NC), lambda i: (0, 0)),     # b2
                pl.BlockSpec((NC, C), lambda i: (0, 0)),     # masks.weight
            ],
            out_specs=stream_spec((tb, C)),
        ),
        compiler_params=pltpu.CompilerParams(
            dimension_semantics=("parallel",),
            vmem_limit_bytes=vmem_limit,
        ),
    )(x, c, w1, b1, w2, b2, masks)
    return out


def reference(x, c, w1, b1, w2, b2, masks):
    h = jnp.maximum(c @ w1 + b1, 0.0)
    weight = jax.nn.softmax(h @ w2 + b2, axis=-1)                  # (B, NC)
    xe = x[:, None, :] * masks[None, :, :] * weight[:, :, None]    # (B, 5, C)
    return xe.mean(axis=1)


if __name__ == "__main__":
    key = jax.random.PRNGKey(0)
    kx, kc, k1, k2, k3, k4, k5 = jax.random.split(key, 7)

    # Deterministic synthetic inputs (shapes match nn.Linear / nn.Embedding in __init__).
    # B=50 is deliberately not a tile multiple: exercises the ragged-last-block path
    # without any host-side pad/slice.
    B = 50
    x = jax.random.normal(kx, (B, IMG_CHANNEL), jnp.float32)
    c = jax.random.normal(kc, (B, ONEHOT_CHANNEL), jnp.float32)
    w1 = jax.random.normal(k1, (ONEHOT_CHANNEL, HIDDEN), jnp.float32) * 0.1
    b1 = jax.random.normal(k2, (1, HIDDEN), jnp.float32) * 0.1
    w2 = jax.random.normal(k3, (HIDDEN, N_CONDITIONS), jnp.float32) * 0.1
    b2 = jax.random.normal(k4, (1, N_CONDITIONS), jnp.float32) * 0.1
    masks = jax.random.normal(k5, (N_CONDITIONS, IMG_CHANNEL), jnp.float32)

    ref = reference(x, c, w1, b1, w2, b2, masks)

    # 1) Auto tiling (single tile on v5e/v6e, two-way split on v7x).
    out = jax.block_until_ready(csa_fusion(x, c, w1, b1, w2, b2, masks))
    assert out.shape == (B, IMG_CHANNEL)
    assert jnp.allclose(out, ref, atol=1e-4, rtol=1e-4), "auto-tile mismatch vs JAX reference"

    # 2) Explicit small tile -> multi-step grid with a ragged last block (no pad / no out slice).
    out_r = jax.block_until_ready(csa_fusion(x, c, w1, b1, w2, b2, masks, tb=16))
    assert jnp.allclose(out_r, ref, atol=1e-4, rtol=1e-4), "ragged-grid mismatch vs JAX reference"

    # 3) Opt-in bf16 streaming of x / out (the c -> weight -> scale path stays f32 in-kernel).
    out_bf = jax.block_until_ready(
        csa_fusion(x.astype(jnp.bfloat16), c, w1, b1, w2, b2, masks,
                   tb=16, out_dtype=jnp.bfloat16))
    assert jnp.allclose(out_bf.astype(jnp.float32), ref, atol=3e-2, rtol=3e-2), \
        "bf16-stream mismatch vs JAX reference"

    print("KERNEL_OK")
</pallas_src>

<mosaic_0001>
module attributes {stable_mosaic.version = 11 : i64} {
  func.func @csa_fusion_kernel(%arg0: i32, %arg1: memref<50x128xf32, #tpu.memory_space<vmem>>, %arg2: memref<50x16xf32, #tpu.memory_space<vmem>>, %arg3: memref<16x64xf32, #tpu.memory_space<vmem>>, %arg4: memref<1x64xf32, #tpu.memory_space<vmem>>, %arg5: memref<64x5xf32, #tpu.memory_space<vmem>>, %arg6: memref<1x5xf32, #tpu.memory_space<vmem>>, %arg7: memref<5x128xf32, #tpu.memory_space<vmem>>, %arg8: memref<50x128xf32, #tpu.memory_space<vmem>>) attributes {dimension_semantics = [#tpu.dimension_semantics<parallel>], iteration_bounds = array<i64: 1>, scalar_prefetch = 0 : i64, scratch_operands = 0 : i64, tpu.core_type = #tpu.core_type<tc>, window_params = [{transform_indices = @transform_0, window_bounds = array<i64: 50, 128>}, {transform_indices = @transform_1, window_bounds = array<i64: 50, 16>}, {pipeline_mode = #tpu.pipeline_mode<synchronous>, transform_indices = @transform_2, window_bounds = array<i64: 16, 64>}, {pipeline_mode = #tpu.pipeline_mode<synchronous>, transform_indices = @transform_3, window_bounds = array<i64: 1, 64>}, {pipeline_mode = #tpu.pipeline_mode<synchronous>, transform_indices = @transform_4, window_bounds = array<i64: 64, 5>}, {pipeline_mode = #tpu.pipeline_mode<synchronous>, transform_indices = @transform_5, window_bounds = array<i64: 1, 5>}, {pipeline_mode = #tpu.pipeline_mode<synchronous>, transform_indices = @transform_6, window_bounds = array<i64: 5, 128>}, {transform_indices = @transform_7, window_bounds = array<i64: 50, 128>}]} {
    %c0 = arith.constant 0 : index
    %c0_0 = arith.constant 0 : index
    %0 = vector.load %arg2[%c0, %c0_0] : memref<50x16xf32, #tpu.memory_space<vmem>>, vector<50x16xf32>
    %c0_1 = arith.constant 0 : index
    %c0_2 = arith.constant 0 : index
    %1 = vector.load %arg3[%c0_1, %c0_2] : memref<16x64xf32, #tpu.memory_space<vmem>>, vector<16x64xf32>
    %cst = arith.constant dense<0.000000e+00> : vector<50x64xf32>
    %2 = tpu.matmul %0, %1, %cst {dimension_numbers = #tpu.dot_dimension_numbers<[1], [0], [0], [1], [0, 0, 1, 1], [], []>} : vector<50x16xf32>, vector<16x64xf32>, vector<50x64xf32> -> vector<50x64xf32>
    %c0_3 = arith.constant 0 : index
    %c0_4 = arith.constant 0 : index
    %3 = vector.load %arg4[%c0_3, %c0_4] : memref<1x64xf32, #tpu.memory_space<vmem>>, vector<1x64xf32>
    %4 = vector.broadcast %3 : vector<1x64xf32> to vector<50x64xf32>
    %5 = arith.addf %2, %4 : vector<50x64xf32>
    %cst_5 = arith.constant 0.000000e+00 : f32
    %6 = vector.broadcast %cst_5 : f32 to vector<50x64xf32>
    %7 = arith.maximumf %5, %6 : vector<50x64xf32>
    %c0_6 = arith.constant 0 : index
    %c0_7 = arith.constant 0 : index
    %8 = vector.load %arg5[%c0_6, %c0_7] : memref<64x5xf32, #tpu.memory_space<vmem>>, vector<64x5xf32>
    %cst_8 = arith.constant dense<0.000000e+00> : vector<50x5xf32>
    %9 = tpu.matmul %7, %8, %cst_8 {dimension_numbers = #tpu.dot_dimension_numbers<[1], [0], [0], [1], [0, 0, 1, 1], [], []>} : vector<50x64xf32>, vector<64x5xf32>, vector<50x5xf32> -> vector<50x5xf32>
    %c0_9 = arith.constant 0 : index
    %c0_10 = arith.constant 0 : index
    %10 = vector.load %arg6[%c0_9, %c0_10] : memref<1x5xf32, #tpu.memory_space<vmem>>, vector<1x5xf32>
    %11 = vector.broadcast %10 : vector<1x5xf32> to vector<50x5xf32>
    %12 = arith.addf %9, %11 : vector<50x5xf32>
    %cst_11 = arith.constant dense<0xFF800000> : vector<50xf32>
    %13 = vector.multi_reduction <maximumf>, %12, %cst_11 [1] : vector<50x5xf32> to vector<50xf32>
    %14 = vector.shape_cast %13 : vector<50xf32> to vector<50x1xf32>
    %15 = vector.broadcast %14 : vector<50x1xf32> to vector<50x5xf32>
    %16 = arith.subf %12, %15 : vector<50x5xf32>
    %17 = math.exp %16 : vector<50x5xf32>
    %cst_12 = arith.constant dense<0.000000e+00> : vector<50xf32>
    %18 = vector.multi_reduction <add>, %17, %cst_12 [1] : vector<50x5xf32> to vector<50xf32>
    %19 = vector.shape_cast %18 : vector<50xf32> to vector<50x1xf32>
    %cst_13 = arith.constant 5.000000e+00 : f32
    %20 = vector.broadcast %cst_13 : f32 to vector<50x1xf32>
    %21 = arith.mulf %19, %20 : vector<50x1xf32>
    %22 = tpu.reciprocal %21 {approx = true} : vector<50x1xf32> -> vector<50x1xf32>
    %23 = arith.mulf %21, %22 : vector<50x1xf32>
    %cst_14 = arith.constant 2.000000e+00 : f32
    %24 = vector.broadcast %cst_14 : f32 to vector<50x1xf32>
    %25 = arith.subf %24, %23 : vector<50x1xf32>
    %26 = arith.mulf %22, %25 : vector<50x1xf32>
    %27 = vector.broadcast %26 : vector<50x1xf32> to vector<50x5xf32>
    %28 = arith.mulf %17, %27 : vector<50x5xf32>
    %c0_15 = arith.constant 0 : index
    %c0_16 = arith.constant 0 : index
    %29 = vector.load %arg7[%c0_15, %c0_16] : memref<5x128xf32, #tpu.memory_space<vmem>>, vector<5x128xf32>
    %cst_17 = arith.constant dense<0.000000e+00> : vector<50x128xf32>
    %30 = tpu.matmul %28, %29, %cst_17 {dimension_numbers = #tpu.dot_dimension_numbers<[1], [0], [0], [1], [0, 0, 1, 1], [], []>} : vector<50x5xf32>, vector<5x128xf32>, vector<50x128xf32> -> vector<50x128xf32>
    %c0_18 = arith.constant 0 : index
    %c0_19 = arith.constant 0 : index
    %31 = vector.load %arg1[%c0_18, %c0_19] : memref<50x128xf32, #tpu.memory_space<vmem>>, vector<50x128xf32>
    %32 = arith.mulf %31, %30 : vector<50x128xf32>
    %c0_20 = arith.constant 0 : index
    %c0_21 = arith.constant 0 : index
    %33 = vector.load %arg8[%c0_20, %c0_21] : memref<50x128xf32, #tpu.memory_space<vmem>>, vector<50x128xf32>
    tpu.vector_store %arg8[%c0_20, %c0_21], %32 {strides = array<i32>} : memref<50x128xf32, #tpu.memory_space<vmem>>, vector<50x128xf32>,
    return
  }
  func.func @transform_0(%arg0: i32) -> (i32, i32) {
    %c0_i32 = arith.constant 0 : i32
    %c0_i32_0 = arith.constant 0 : i32
    return %arg0, %c0_i32 : i32, i32
  }
  func.func @transform_1(%arg0: i32) -> (i32, i32) {
    %c0_i32 = arith.constant 0 : i32
    %c0_i32_0 = arith.constant 0 : i32
    return %arg0, %c0_i32 : i32, i32
  }
  func.func @transform_2(%arg0: i32) -> (i32, i32) {
    %c0_i32 = arith.constant 0 : i32
    %c0_i32_0 = arith.constant 0 : i32
    %c0_i32_1 = arith.constant 0 : i32
    return %c0_i32, %c0_i32_0 : i32, i32
  }
  func.func @transform_3(%arg0: i32) -> (i32, i32) {
    %c0_i32 = arith.constant 0 : i32
    %c0_i32_0 = arith.constant 0 : i32
    %c0_i32_1 = arith.constant 0 : i32
    return %c0_i32, %c0_i32_0 : i32, i32
  }
  func.func @transform_4(%arg0: i32) -> (i32, i32) {
    %c0_i32 = arith.constant 0 : i32
    %c0_i32_0 = arith.constant 0 : i32
    %c0_i32_1 = arith.constant 0 : i32
    return %c0_i32, %c0_i32_0 : i32, i32
  }
  func.func @transform_5(%arg0: i32) -> (i32, i32) {
    %c0_i32 = arith.constant 0 : i32
    %c0_i32_0 = arith.constant 0 : i32
    %c0_i32_1 = arith.constant 0 : i32
    return %c0_i32, %c0_i32_0 : i32, i32
  }
  func.func @transform_6(%arg0: i32) -> (i32, i32) {
    %c0_i32 = arith.constant 0 : i32
    %c0_i32_0 = arith.constant 0 : i32
    %c0_i32_1 = arith.constant 0 : i32
    return %c0_i32, %c0_i32_0 : i32, i32
  }
  func.func @transform_7(%arg0: i32) -> (i32, i32) {
    %c0_i32 = arith.constant 0 : i32
    %c0_i32_0 = arith.constant 0 : i32
    return %arg0, %c0_i32 : i32, i32
  }
}

</mosaic_0001>

<llo_original>
// kernel: tpu_custom_call.1
$region0: #{tpu_custom_call.1}
  #allocation0 [shape = 'u32[]', space=smem, size = 0x4, offset = 0x4, fixed_abs, tag = 'smem constant byte address 0x4 - core index']
  #allocation1 [shape = 'u32[144,128]{1,0:T(1,128)}', space=vmem, size = 0x12000, scoped, tag = 'internal scratch']
  %s0 = inlined_call_operand.vmem [shape: f32[50,128], index: 0, kind: input, shape index: {}]
  %s1 = inlined_call_operand.vmem [shape: f32[50,16], index: 1, kind: input, shape index: {}]
  %s2 = inlined_call_operand.vmem [shape: f32[16,64], index: 2, kind: input, shape index: {}]
  %s3 = inlined_call_operand.vmem [shape: f32[1,64], index: 3, kind: input, shape index: {}]
  %s4 = inlined_call_operand.vmem [shape: f32[64,5], index: 4, kind: input, shape index: {}]
  %s5 = inlined_call_operand.vmem [shape: f32[1,5], index: 5, kind: input, shape index: {}]
  %s6 = inlined_call_operand.vmem [shape: f32[5,128], index: 6, kind: input, shape index: {}]
  %s7 = inlined_call_operand.hbm [shape: f32[50,128], index: 7, kind: output, shape index: {}]
  %s8 = sld [smem:[#allocation0]]
  $region38: #{tpu_custom_call.1} parent=0
    _
  %s10 = ssub.s32 1, %s8
  %s11 = scalar_select 0, %s10, %s8
  $region1: #{tpu_custom_call.1} parent=0
    #allocation2 [shape = 'u8[28672]{0}', space=vmem, size = 0x7000, scoped, tag = 'output window, operand 0, single buffered']
    #allocation3 [shape = 's32[1]{0}', space=sflag, size = 0x4, scoped, tag = 'scoped memory for tpu_custom_call.1']
    %12 = vsyncpa [#allocation3], 0
    // Predicated region
    $region2: #{tpu_custom_call.1} parent=1 // pred_check
      _
    $region3: #{tpu_custom_call.1} parent=1 // pred_check_branch
      %14 = sbr.rel (0) target = $region5
    $region4: #{tpu_custom_call.1} parent=1 // pred_region
      _
    $region5: #{tpu_custom_call.1} parent=1 // pred_fallthru
      _
    // Predicated region
    $region6: #{tpu_custom_call.1} parent=1 // pred_check
      _
    $region7: #{tpu_custom_call.1} parent=1 // pred_check_branch
      %16 = sbr.rel (0) target = $region9
    $region8: #{tpu_custom_call.1} parent=1 // pred_region
      _
    $region9: #{tpu_custom_call.1} parent=1 // pred_fallthru
      _
    // Predicated region
    $region10: #{tpu_custom_call.1} parent=1 // pred_check
      _
    $region11: #{tpu_custom_call.1} parent=1 // pred_check_branch
      %18 = sbr.rel (0) target = $region13
    $region12: #{tpu_custom_call.1} parent=1 // pred_region
      _
    $region13: #{tpu_custom_call.1} parent=1 // pred_fallthru
      _
    // Predicated region
    $region14: #{tpu_custom_call.1} parent=1 // pred_check
      _
    $region15: #{tpu_custom_call.1} parent=1 // pred_check_branch
      %20 = sbr.rel (0) target = $region17
    $region16: #{tpu_custom_call.1} parent=1 // pred_region
      _
    $region17: #{tpu_custom_call.1} parent=1 // pred_fallthru
      _
    // Predicated region
    $region18: #{tpu_custom_call.1} parent=1 // pred_check
      _
    $region19: #{tpu_custom_call.1} parent=1 // pred_check_branch
      %22 = sbr.rel (0) target = $region21
    $region20: #{tpu_custom_call.1} parent=1 // pred_region
      _
    $region21: #{tpu_custom_call.1} parent=1 // pred_fallthru
      _
    // Predicated region
    $region22: #{tpu_custom_call.1} parent=1 // pred_check
      _
    $region23: #{tpu_custom_call.1} parent=1 // pred_check_branch
      %24 = sbr.rel (0) target = $region25
    $region24: #{tpu_custom_call.1} parent=1 // pred_region
      _
    $region25: #{tpu_custom_call.1} parent=1 // pred_fallthru
      _
    // Predicated region
    $region26: #{tpu_custom_call.1} parent=1 // pred_check
      _
    $region27: #{tpu_custom_call.1} parent=1 // pred_check_branch
      %26 = sbr.rel (0) target = $region29
    $region28: #{tpu_custom_call.1} parent=1 // pred_region
      _
    $region29: #{tpu_custom_call.1} parent=1 // pred_fallthru
      _
    %v27 = vld [vmem:[%s1] sm:$0xff]
    %v28 = vld [vmem:[%s1 + $0x8] sm:$0xff]
    %v29 = vld [vmem:[%s1 + $0x10] sm:$0xff]
    %v30 = vld [vmem:[%s1 + $0x18] sm:$0xff]
    %v31 = vld [vmem:[%s1 + $0x20] sm:$0xff]
    %v32 = vld [vmem:[%s1 + $0x28] sm:$0xff]
    %v33 = vld [vmem:[%s1 + $0x30] sm:$0x3]
    %v34 = vld [vmem:[%s2] sm:$0xff]
    %v35 = vld [vmem:[%s2 + $0x8] sm:$0xff]
    %v36 = vld [vmem:[%s3] sm:$0x1]
    %v38 = vlaneseq
    %v39 = vshrl.u32 %v38, 7
    %v40 = vsub.s32 0, %v39
    %v41 = vrot.slane %v36, %v40
    %vm43 = vcmask 130048
    %v45 = vsel %vm43, %v27, 0
    %v48 = vsel %vm43, %v28, 0
    %v51 = vsel %vm43, %v29, 0
    %v54 = vsel %vm43, %v30, 0
    %v57 = vsel %vm43, %v31, 0
    %v60 = vsel %vm43, %v32, 0
    %v63 = vsel %vm43, %v33, 0
    %65 = vmatprep.subr.mxu0 0.0
    %66 = vmatpush1.msra.mxu0 %v34
    %67 = vmatprep.subr.mxu0 0.0
    %68 = vmatpush1.msra.mxu0 %v35
    %69 = vmatprep.subr.mxu0 0.0
    %70 = vmatpush1.msra.mxu0 0.0
    %71 = vmatprep.subr.mxu0 0.0
    %72 = vmatpush1.msra.mxu0 0.0
    %73 = vmatprep.subr.mxu0 0.0
    %74 = vmatpush1.msra.mxu0 0.0
    %75 = vmatprep.subr.mxu0 0.0
    %76 = vmatpush1.msra.mxu0 0.0
    %77 = vmatprep.subr.mxu0 0.0
    %78 = vmatpush1.msra.mxu0 0.0
    %79 = vmatprep.subr.mxu0 0.0
    %80 = vmatpush1.msra.mxu0 0.0
    %81 = vmatprep.subr.mxu0 0.0
    %82 = vmatpush1.msra.mxu0 0.0
    %83 = vmatprep.subr.mxu0 0.0
    %84 = vmatpush1.msra.mxu0 0.0
    %85 = vmatprep.subr.mxu0 0.0
    %86 = vmatpush1.msra.mxu0 0.0
    %87 = vmatprep.subr.mxu0 0.0
    %88 = vmatpush1.msra.mxu0 0.0
    %89 = vmatprep.subr.mxu0 0.0
    %90 = vmatpush1.msra.mxu0 0.0
    %91 = vmatprep.subr.mxu0 0.0
    %92 = vmatpush1.msra.mxu0 0.0
    %93 = vmatprep.subr.mxu0 0.0
    %94 = vmatpush1.msra.mxu0 0.0
    %95 = vmatprep.subr.mxu0 0.0
    %96 = vmatpush1.msra.mxu0 0.0
    %97 = vmatprep.subr.mxu0 0.0
    %98 = vmatpush1.msra.mxu0 0.0
    %99 = vmatprep.subr.mxu0 0.0
    %100 = vmatpush1.msra.mxu0 0.0
    %101 = vmatprep.subr.mxu0 0.0
    %102 = vmatpush1.msra.mxu0 0.0
    %103 = vmatprep.subr.mxu0 0.0
    %104 = vmatpush1.msra.mxu0 0.0
    %105 = vmatprep.subr.mxu0 0.0
    %106 = vmatpush1.msra.mxu0 0.0
    %107 = vmatprep.subr.mxu0 0.0
    %108 = vmatpush1.msra.mxu0 0.0
    %109 = vmatprep.subr.mxu0 0.0
    %110 = vmatpush1.msra.mxu0 0.0
    %111 = vmatprep.subr.mxu0 0.0
    %112 = vmatpush1.msra.mxu0 0.0
    %113 = vmatprep.subr.mxu0 0.0
    %114 = vmatpush1.msra.mxu0 0.0
    %115 = vmatprep.subr.mxu0 0.0
    %116 = vmatpush1.msra.mxu0 0.0
    %117 = vmatprep.subr.mxu0 0.0
    %118 = vmatpush1.msra.mxu0 0.0
    %119 = vmatprep.subr.mxu0 0.0
    %120 = vmatpush1.msra.mxu0 0.0
    %121 = vmatprep.subr.mxu0 0.0
    %122 = vmatpush1.msra.mxu0 0.0
    %123 = vmatprep.subr.mxu0 0.0
    %124 = vmatpush1.msra.mxu0 0.0
    %125 = vmatprep.subr.mxu0 0.0
    %126 = vmatpush1.msra.mxu0 0.0
    %127 = vmatprep.subr.mxu0 0.0
    %128 = vmatpush1.msra.mxu0 0.0
    %129 = vmatprep.mubr.f32.mxu0 0.0
    %130 = vmatmul.mubr.f32.gmra.mrb[0].mxu0 %v45
    %v131 = vpop.f32.mrb[0].mxu0
    %v132 = vadd.f32 %v41, %v131
    %v133 = vpop.f32.mrb[0].mxu0
    %134 = vmatprep.mubr.f32.mxu0 0.0
    %135 = vmatmul.mubr.f32.gmra.mrb[0].mxu0 %v48
    %v136 = vpop.f32.mrb[0].mxu0
    %v137 = vadd.f32 %v41, %v136
    %v138 = vpop.f32.mrb[0].mxu0
    %139 = vmatprep.mubr.f32.mxu0 0.0
    %140 = vmatmul.mubr.f32.gmra.mrb[0].mxu0 %v51
    %v141 = vpop.f32.mrb[0].mxu0
    %v142 = vadd.f32 %v41, %v141
    %v143 = vpop.f32.mrb[0].mxu0
    %144 = vmatprep.mubr.f32.mxu0 0.0
    %145 = vmatmul.mubr.f32.gmra.mrb[0].mxu0 %v54
    %v146 = vpop.f32.mrb[0].mxu0
    %v147 = vadd.f32 %v41, %v146
    %v148 = vpop.f32.mrb[0].mxu0
    %149 = vmatprep.mubr.f32.mxu0 0.0
    %150 = vmatmul.mubr.f32.gmra.mrb[0].mxu0 %v57
    %v151 = vpop.f32.mrb[0].mxu0
    %v152 = vadd.f32 %v41, %v151
    %v153 = vpop.f32.mrb[0].mxu0
    %154 = vmatprep.mubr.f32.mxu0 0.0
    %155 = vmatmul.mubr.f32.gmra.mrb[0].mxu0 %v60
    %v156 = vpop.f32.mrb[0].mxu0
    %v157 = vadd.f32 %v41, %v156
    %v158 = vpop.f32.mrb[0].mxu0
    %159 = vmatprep.mubr.f32.mxu0 0.0
    %160 = vmatmul.mubr.f32.gmra.mrb[0].mxu0 %v63
    %v161 = vpop.f32.mrb[0].mxu0
    %v162 = vadd.f32 %v41, %v161
    %v163 = vpop.f32.mrb[0].mxu0
    %164 = vdwg.mxu0
    %v165 = vmax.f32 %v132, 0.0
    %v166 = vmax.f32 %v137, 0.0
    %v167 = vmax.f32 %v142, 0.0
    %v168 = vmax.f32 %v147, 0.0
    %v169 = vmax.f32 %v152, 0.0
    %v170 = vmax.f32 %v157, 0.0
    %v171 = vmax.f32 %v162, 0.0
    %v172 = vld [vmem:[%s4] sm:$0xff]
    %v173 = vld [vmem:[%s4 + $0x8] sm:$0xff]
    %v174 = vld [vmem:[%s4 + $0x10] sm:$0xff]
    %v175 = vld [vmem:[%s4 + $0x18] sm:$0xff]
    %v176 = vld [vmem:[%s4 + $0x20] sm:$0xff]
    %v177 = vld [vmem:[%s4 + $0x28] sm:$0xff]
    %v178 = vld [vmem:[%s4 + $0x30] sm:$0xff]
    %v179 = vld [vmem:[%s4 + $0x38] sm:$0xff]
    %v180 = vld [vmem:[%s5] sm:$0x1]
    %v182 = vlaneseq
    %v183 = vshrl.u32 %v182, 7
    %v184 = vsub.s32 0, %v183
    %v185 = vrot.slane %v180, %v184
    %vm187 = vcmask 523264
    %v189 = vsel %vm187, %v165, 0
    %v192 = vsel %vm187, %v166, 0
    %v195 = vsel %vm187, %v167, 0
    %v198 = vsel %vm187, %v168, 0
    %v201 = vsel %vm187, %v169, 0
    %v204 = vsel %vm187, %v170, 0
    %v207 = vsel %vm187, %v171, 0
    %209 = vmatprep.subr.mxu0 0.0
    %210 = vmatpush1.msra.mxu0 %v172
    %211 = vmatprep.subr.mxu0 0.0
    %212 = vmatpush1.msra.mxu0 %v173
    %213 = vmatprep.subr.mxu0 0.0
    %214 = vmatpush1.msra.mxu0 %v174
    %215 = vmatprep.subr.mxu0 0.0
    %216 = vmatpush1.msra.mxu0 %v175
    %217 = vmatprep.subr.mxu0 0.0
    %218 = vmatpush1.msra.mxu0 %v176
    %219 = vmatprep.subr.mxu0 0.0
    %220 = vmatpush1.msra.mxu0 %v177
    %221 = vmatprep.subr.mxu0 0.0
    %222 = vmatpush1.msra.mxu0 %v178
    %223 = vmatprep.subr.mxu0 0.0
    %224 = vmatpush1.msra.mxu0 %v179
    %225 = vmatprep.subr.mxu0 0.0
    %226 = vmatpush1.msra.mxu0 0.0
    %227 = vmatprep.subr.mxu0 0.0
    %228 = vmatpush1.msra.mxu0 0.0
    %229 = vmatprep.subr.mxu0 0.0
    %230 = vmatpush1.msra.mxu0 0.0
    %231 = vmatprep.subr.mxu0 0.0
    %232 = vmatpush1.msra.mxu0 0.0
    %233 = vmatprep.subr.mxu0 0.0
    %234 = vmatpush1.msra.mxu0 0.0
    %235 = vmatprep.subr.mxu0 0.0
    %236 = vmatpush1.msra.mxu0 0.0
    %237 = vmatprep.subr.mxu0 0.0
    %238 = vmatpush1.msra.mxu0 0.0
    %239 = vmatprep.subr.mxu0 0.0
    %240 = vmatpush1.msra.mxu0 0.0
    %241 = vmatprep.subr.mxu0 0.0
    %242 = vmatpush1.msra.mxu0 0.0
    %243 = vmatprep.subr.mxu0 0.0
    %244 = vmatpush1.msra.mxu0 0.0
    %245 = vmatprep.subr.mxu0 0.0
    %246 = vmatpush1.msra.mxu0 0.0
    %247 = vmatprep.subr.mxu0 0.0
    %248 = vmatpush1.msra.mxu0 0.0
    %249 = vmatprep.subr.mxu0 0.0
    %250 = vmatpush1.msra.mxu0 0.0
    %251 = vmatprep.subr.mxu0 0.0
    %252 = vmatpush1.msra.mxu0 0.0
    %253 = vmatprep.subr.mxu0 0.0
    %254 = vmatpush1.msra.mxu0 0.0
    %255 = vmatprep.subr.mxu0 0.0
    %256 = vmatpush1.msra.mxu0 0.0
    %257 = vmatprep.subr.mxu0 0.0
    %258 = vmatpush1.msra.mxu0 0.0
    %259 = vmatprep.subr.mxu0 0.0
    %260 = vmatpush1.msra.mxu0 0.0
    %261 = vmatprep.subr.mxu0 0.0
    %262 = vmatpush1.msra.mxu0 0.0
    %263 = vmatprep.subr.mxu0 0.0
    %264 = vmatpush1.msra.mxu0 0.0
    %265 = vmatprep.subr.mxu0 0.0
    %266 = vmatpush1.msra.mxu0 0.0
    %267 = vmatprep.subr.mxu0 0.0
    %268 = vmatpush1.msra.mxu0 0.0
    %269 = vmatprep.subr.mxu0 0.0
    %270 = vmatpush1.msra.mxu0 0.0
    %271 = vmatprep.subr.mxu0 0.0
    %272 = vmatpush1.msra.mxu0 0.0
    %273 = vmatprep.mubr.f32.mxu0 0.0
    %274 = vmatmul.mubr.f32.gmra.mrb[0].mxu0 %v189
    %v275 = vpop.f32.mrb[0].mxu0
    %v276 = vadd.f32 %v185, %v275
    %v277 = vpop.f32.mrb[0].mxu0
    %278 = vmatprep.mubr.f32.mxu0 0.0
    %279 = vmatmul.mubr.f32.gmra.mrb[0].mxu0 %v192
    %v280 = vpop.f32.mrb[0].mxu0
    %v281 = vadd.f32 %v185, %v280
    %v282 = vpop.f32.mrb[0].mxu0
    %283 = vmatprep.mubr.f32.mxu0 0.0
    %284 = vmatmul.mubr.f32.gmra.mrb[0].mxu0 %v195
    %v285 = vpop.f32.mrb[0].mxu0
    %v286 = vadd.f32 %v185, %v285
    %v287 = vpop.f32.mrb[0].mxu0
    %288 = vmatprep.mubr.f32.mxu0 0.0
    %289 = vmatmul.mubr.f32.gmra.mrb[0].mxu0 %v198
    %v290 = vpop.f32.mrb[0].mxu0
    %v291 = vadd.f32 %v185, %v290
    %v292 = vpop.f32.mrb[0].mxu0
    %293 = vmatprep.mubr.f32.mxu0 0.0
    %294 = vmatmul.mubr.f32.gmra.mrb[0].mxu0 %v201
    %v295 = vpop.f32.mrb[0].mxu0
    %v296 = vadd.f32 %v185, %v295
    %v297 = vpop.f32.mrb[0].mxu0
    %298 = vmatprep.mubr.f32.mxu0 0.0
    %299 = vmatmul.mubr.f32.gmra.mrb[0].mxu0 %v204
    %v300 = vpop.f32.mrb[0].mxu0
    %v301 = vadd.f32 %v185, %v300
    %v302 = vpop.f32.mrb[0].mxu0
    %303 = vmatprep.mubr.f32.mxu0 0.0
    %304 = vmatmul.mubr.f32.gmra.mrb[0].mxu0 %v207
    %v305 = vpop.f32.mrb[0].mxu0
    %v306 = vadd.f32 %v185, %v305
    %v307 = vpop.f32.mrb[0].mxu0
    %308 = vdwg.mxu0
    %vm309 = vcmask 39936
    %v310 = vsel %vm309, %v276, -inf
    %311 = vmax.xlane.f32.xlu0 %v310
    %v312 = vpop.xlane.xlu0 %311
    %v313 = vsel %vm309, %v281, -inf
    %314 = vmax.xlane.f32.xlu0 %v313
    %v315 = vpop.xlane.xlu0 %314
    %v316 = vsel %vm309, %v286, -inf
    %317 = vmax.xlane.f32.xlu0 %v316
    %v318 = vpop.xlane.xlu0 %317
    %v319 = vsel %vm309, %v291, -inf
    %320 = vmax.xlane.f32.xlu0 %v319
    %v321 = vpop.xlane.xlu0 %320
    %v322 = vsel %vm309, %v296, -inf
    %323 = vmax.xlane.f32.xlu0 %v322
    %v324 = vpop.xlane.xlu0 %323
    %v325 = vsel %vm309, %v301, -inf
    %326 = vmax.xlane.f32.xlu0 %v325
    %v327 = vpop.xlane.xlu0 %326
    %vm328 = vcmask 33792
    %v329 = vsel %vm328, %v306, -inf
    %330 = vmax.xlane.f32.xlu0 %v329
    %v331 = vpop.xlane.xlu0 %330
    %v332 = vsub.f32 %v276, %v312
    %v333 = vsub.f32 %v281, %v315
    %v334 = vsub.f32 %v286, %v318
    %v335 = vsub.f32 %v291, %v321
    %v336 = vsub.f32 %v296, %v324
    %v337 = vsub.f32 %v301, %v327
    %v338 = vsub.f32 %v306, %v331
    %v339 = vmul.f32 %v332, 1.442695
    %v340 = vpow.pop %v339
    %v341 = vmul.f32 %v333, 1.442695
    %v342 = vpow.pop %v341
    %v343 = vmul.f32 %v334, 1.442695
    %v344 = vpow.pop %v343
    %v345 = vmul.f32 %v335, 1.442695
    %v346 = vpow.pop %v345
    %v347 = vmul.f32 %v336, 1.442695
    %v348 = vpow.pop %v347
    %v349 = vmul.f32 %v337, 1.442695
    %v350 = vpow.pop %v349
    %v351 = vmul.f32 %v338, 1.442695
    %v352 = vpow.pop %v351
    %v353 = vsel %vm309, %v340, 0.0
    %354 = vadd.xlane.f32.xlu0 %v353
    %v355 = vpop.xlane.xlu0 %354
    %v356 = vsel %vm309, %v342, 0.0
    %357 = vadd.xlane.f32.xlu0 %v356
    %v358 = vpop.xlane.xlu0 %357
    %v359 = vsel %vm309, %v344, 0.0
    %360 = vadd.xlane.f32.xlu0 %v359
    %v361 = vpop.xlane.xlu0 %360
    %v362 = vsel %vm309, %v346, 0.0
    %363 = vadd.xlane.f32.xlu0 %v362
    %v364 = vpop.xlane.xlu0 %363
    %v365 = vsel %vm309, %v348, 0.0
    %366 = vadd.xlane.f32.xlu0 %v365
    %v367 = vpop.xlane.xlu0 %366
    %v368 = vsel %vm309, %v350, 0.0
    %369 = vadd.xlane.f32.xlu0 %v368
    %v370 = vpop.xlane.xlu0 %369
    %v371 = vsel %vm328, %v352, 0.0
    %372 = vadd.xlane.f32.xlu0 %v371
    %v373 = vpop.xlane.xlu0 %372
    %v374 = vmul.f32 %v355, 5.0
    %v375 = vmul.f32 %v358, 5.0
    %v376 = vmul.f32 %v361, 5.0
    %v377 = vmul.f32 %v364, 5.0
    %v378 = vmul.f32 %v367, 5.0
    %v379 = vmul.f32 %v370, 5.0
    %v380 = vmul.f32 %v373, 5.0
    %v381 = vrcp.pop %v374
    %v382 = vrcp.pop %v375
    %v383 = vrcp.pop %v376
    %v384 = vrcp.pop %v377
    %v385 = vrcp.pop %v378
    %v386 = vrcp.pop %v379
    %v387 = vrcp.pop %v380
    %v388 = vmul.f32 %v374, %v381
    %v389 = vmul.f32 %v375, %v382
    %v390 = vmul.f32 %v376, %v383
    %v391 = vmul.f32 %v377, %v384
    %v392 = vmul.f32 %v378, %v385
    %v393 = vmul.f32 %v379, %v386
    %v394 = vmul.f32 %v380, %v387
    %v395 = vsub.f32 2.0, %v388
    %v396 = vsub.f32 2.0, %v389
    %v397 = vsub.f32 2.0, %v390
    %v398 = vsub.f32 2.0, %v391
    %v399 = vsub.f32 2.0, %v392
    %v400 = vsub.f32 2.0, %v393
    %v401 = vsub.f32 2.0, %v394
    %v402 = vmul.f32 %v381, %v395
    %v403 = vmul.f32 %v382, %v396
    %v404 = vmul.f32 %v383, %v397
    %v405 = vmul.f32 %v384, %v398
    %v406 = vmul.f32 %v385, %v399
    %v407 = vmul.f32 %v386, %v400
    %v408 = vmul.f32 %v387, %v401
    %v409 = vmul.f32 %v340, %v402
    %v410 = vmul.f32 %v342, %v403
    %v411 = vmul.f32 %v344, %v404
    %v412 = vmul.f32 %v346, %v405
    %v413 = vmul.f32 %v348, %v406
    %v414 = vmul.f32 %v350, %v407
    %v415 = vmul.f32 %v352, %v408
    %v416 = vld [vmem:[%s6] sm:$0x1f]
    %v418 = vsel %vm309, %v409, 0
    %v421 = vsel %vm309, %v410, 0
    %v424 = vsel %vm309, %v411, 0
    %v427 = vsel %vm309, %v412, 0
    %v430 = vsel %vm309, %v413, 0
    %v433 = vsel %vm309, %v414, 0
    %v436 = vsel %vm309, %v415, 0
    %vm438 = vcmask 1044480
    %v440 = vsel %vm438, %v416, 0
    %442 = vmatprep.subr.mxu0 0.0
    %443 = vmatpush1.msra.mxu0 %v440
    %444 = vmatprep.subr.mxu0 0.0
    %445 = vmatpush1.msra.mxu0 0.0
    %446 = vmatprep.subr.mxu0 0.0
    %447 = vmatpush1.msra.mxu0 0.0
    %448 = vmatprep.subr.mxu0 0.0
    %449 = vmatpush1.msra.mxu0 0.0
    %450 = vmatprep.subr.mxu0 0.0
    %451 = vmatpush1.msra.mxu0 0.0
    %452 = vmatprep.subr.mxu0 0.0
    %453 = vmatpush1.msra.mxu0 0.0
    %454 = vmatprep.subr.mxu0 0.0
    %455 = vmatpush1.msra.mxu0 0.0
    %456 = vmatprep.subr.mxu0 0.0
    %457 = vmatpush1.msra.mxu0 0.0
    %458 = vmatprep.subr.mxu0 0.0
    %459 = vmatpush1.msra.mxu0 0.0
    %460 = vmatprep.subr.mxu0 0.0
    %461 = vmatpush1.msra.mxu0 0.0
    %462 = vmatprep.subr.mxu0 0.0
    %463 = vmatpush1.msra.mxu0 0.0
    %464 = vmatprep.subr.mxu0 0.0
    %465 = vmatpush1.msra.mxu0 0.0
    %466 = vmatprep.subr.mxu0 0.0
    %467 = vmatpush1.msra.mxu0 0.0
    %468 = vmatprep.subr.mxu0 0.0
    %469 = vmatpush1.msra.mxu0 0.0
    %470 = vmatprep.subr.mxu0 0.0
    %471 = vmatpush1.msra.mxu0 0.0
    %472 = vmatprep.subr.mxu0 0.0
    %473 = vmatpush1.msra.mxu0 0.0
    %474 = vmatprep.subr.mxu0 0.0
    %475 = vmatpush1.msra.mxu0 0.0
    %476 = vmatprep.subr.mxu0 0.0
    %477 = vmatpush1.msra.mxu0 0.0
    %478 = vmatprep.subr.mxu0 0.0
    %479 = vmatpush1.msra.mxu0 0.0
    %480 = vmatprep.subr.mxu0 0.0
    %481 = vmatpush1.msra.mxu0 0.0
    %482 = vmatprep.subr.mxu0 0.0
    %483 = vmatpush1.msra.mxu0 0.0
    %484 = vmatprep.subr.mxu0 0.0
    %485 = vmatpush1.msra.mxu0 0.0
    %486 = vmatprep.subr.mxu0 0.0
    %487 = vmatpush1.msra.mxu0 0.0
    %488 = vmatprep.subr.mxu0 0.0
    %489 = vmatpush1.msra.mxu0 0.0
    %490 = vmatprep.subr.mxu0 0.0
    %491 = vmatpush1.msra.mxu0 0.0
    %492 = vmatprep.subr.mxu0 0.0
    %493 = vmatpush1.msra.mxu0 0.0
    %494 = vmatprep.subr.mxu0 0.0
    %495 = vmatpush1.msra.mxu0 0.0
    %496 = vmatprep.subr.mxu0 0.0
    %497 = vmatpush1.msra.mxu0 0.0
    %498 = vmatprep.subr.mxu0 0.0
    %499 = vmatpush1.msra.mxu0 0.0
    %500 = vmatprep.subr.mxu0 0.0
    %501 = vmatpush1.msra.mxu0 0.0
    %502 = vmatprep.subr.mxu0 0.0
    %503 = vmatpush1.msra.mxu0 0.0
    %504 = vmatprep.subr.mxu0 0.0
    %505 = vmatpush1.msra.mxu0 0.0
    %506 = vmatprep.mubr.f32.mxu0 0.0
    %507 = vmatmul.mubr.f32.gmra.mrb[0].mxu0 %v418
    %v508 = vpop.f32.mrb[0].mxu0
    %v509 = vadd.f32 0.0, %v508
    %v510 = vpop.f32.mrb[0].mxu0
    %511 = vmatprep.mubr.f32.mxu0 0.0
    %512 = vmatmul.mubr.f32.gmra.mrb[0].mxu0 %v421
    %v513 = vpop.f32.mrb[0].mxu0
    %v514 = vadd.f32 0.0, %v513
    %v515 = vpop.f32.mrb[0].mxu0
    %516 = vmatprep.mubr.f32.mxu0 0.0
    %517 = vmatmul.mubr.f32.gmra.mrb[0].mxu0 %v424
    %v518 = vpop.f32.mrb[0].mxu0
    %v519 = vadd.f32 0.0, %v518
    %v520 = vpop.f32.mrb[0].mxu0
    %521 = vmatprep.mubr.f32.mxu0 0.0
    %522 = vmatmul.mubr.f32.gmra.mrb[0].mxu0 %v427
    %v523 = vpop.f32.mrb[0].mxu0
    %v524 = vadd.f32 0.0, %v523
    %v525 = vpop.f32.mrb[0].mxu0
    %526 = vmatprep.mubr.f32.mxu0 0.0
    %527 = vmatmul.mubr.f32.gmra.mrb[0].mxu0 %v430
    %v528 = vpop.f32.mrb[0].mxu0
    %v529 = vadd.f32 0.0, %v528
    %v530 = vpop.f32.mrb[0].mxu0
    %531 = vmatprep.mubr.f32.mxu0 0.0
    %532 = vmatmul.mubr.f32.gmra.mrb[0].mxu0 %v433
    %v533 = vpop.f32.mrb[0].mxu0
    %v534 = vadd.f32 0.0, %v533
    %v535 = vpop.f32.mrb[0].mxu0
    %536 = vmatprep.mubr.f32.mxu0 0.0
    %537 = vmatmul.mubr.f32.gmra.mrb[0].mxu0 %v436
    %v538 = vpop.f32.mrb[0].mxu0
    %v539 = vadd.f32 0.0, %v538
    %v540 = vpop.f32.mrb[0].mxu0
    %541 = vdwg.mxu0
    %v542 = vld [vmem:[%s0] sm:$0xff]
    %v543 = vld [vmem:[%s0 + $0x8] sm:$0xff]
    %v544 = vld [vmem:[%s0 + $0x10] sm:$0xff]
    %v545 = vld [vmem:[%s0 + $0x18] sm:$0xff]
    %v546 = vld [vmem:[%s0 + $0x20] sm:$0xff]
    %v547 = vld [vmem:[%s0 + $0x28] sm:$0xff]
    %v548 = vld [vmem:[%s0 + $0x30] sm:$0x3]
    %v549 = vmul.f32 %v542, %v509
    %v550 = vmul.f32 %v543, %v514
    %v551 = vmul.f32 %v544, %v519
    %v552 = vmul.f32 %v545, %v524
    %v553 = vmul.f32 %v546, %v529
    %v554 = vmul.f32 %v547, %v534
    %v555 = vmul.f32 %v548, %v539
    %556 = vst [vmem:[#allocation2] sm:$0xff] %v549
    %557 = vst [vmem:[#allocation2 + $0x8] sm:$0xff] %v550
    %558 = vst [vmem:[#allocation2 + $0x10] sm:$0xff] %v551
    %559 = vst [vmem:[#allocation2 + $0x18] sm:$0xff] %v552
    %560 = vst [vmem:[#allocation2 + $0x20] sm:$0xff] %v553
    %561 = vst [vmem:[#allocation2 + $0x28] sm:$0xff] %v554
    %562 = vst [vmem:[#allocation2 + $0x30] sm:$0x3] %v555
    // Predicated region
    $region30: #{tpu_custom_call.1} parent=1 // pred_check
      _
    $region31: #{tpu_custom_call.1} parent=1 // pred_check_branch
      %564 = sbr.rel (0) target = $region33
    $region32: #{tpu_custom_call.1} parent=1 // pred_region
      %s566 = ssub.s32 896, 896
      %567 = vsyncadd [#allocation3], %s566
      %s568 = sshll.u32 [#allocation2], 4
      %s569 = int_to_ptr.vmem [resolvable:$true] %s568
      %574 = dma.vmem_to_hbm [thread:$0]  %s569, 896, %s7, [#allocation3], 128, 128, 8
    $region33: #{tpu_custom_call.1} parent=1 // pred_fallthru
      _
    // Predicated region
    $region34: #{tpu_custom_call.1} parent=1 // pred_check
      _
    $region35: #{tpu_custom_call.1} parent=1 // pred_check_branch
      %576 = sbr.rel (0) target = $region37
    $region36: #{tpu_custom_call.1} parent=1 // pred_region
      %577 = dma.done [#allocation3], 896
    $region37: #{tpu_custom_call.1} parent=1 // pred_fallthru
      _
    %578 = vsyncpa [#allocation3], 1

</llo_original>
